<compile_context>
chip_gen: v7x
topology: tpu7x:2x2x1
jax: 0.10.0
libtpu: 0.0.40
codegen_flags: <defaults>
</compile_context>

<pallas_src>
import jax
import jax.numpy as jnp
from jax import lax
from jax.experimental import pallas as pl
from jax.experimental.pallas import tpu as pltpu

EPS = 1e-3          # config.eps
_GR = 16            # bf16 sublane tile -> row-group size inside weight slabs


def _round_up(x, m):
    return (x + m - 1) // m * m


def _smooth_l1_diff(d):
    # F.smooth_l1_loss(a, b, beta=1.0, reduction='none') depends only on a-b.
    ad = jnp.abs(d)
    return jnp.where(ad < 1.0, 0.5 * d * d, ad - 0.5)


def _w1_offsets(D, CTX):
    off_x = _round_up(CTX, _GR)            # w1x row group
    off_wb = off_x + _round_up(D, _GR)     # w1b row group
    off_b1 = off_wb + _GR                  # b1 row group
    return off_x, off_wb, off_b1, off_b1 + _GR


def _w2_offsets(H):
    off_b2 = _round_up(H, _GR)             # b2 row group
    return off_b2, off_b2 + _GR


def _choose_tb(B):
    # >=256-row dots where the batch allows (v6e/v7x MXU is 2x256x256).  At
    # TB=512 the double-buffered f32 activation slab is ~0.5 MiB + ~30 KiB of
    # resident weights, far under the default scoped VMEM on v5e (16 MiB) and
    # v6e/v7x (32 MiB), so no vmem_limit_bytes override is needed.
    if B >= 512:
        return 512
    return max(8, _round_up(B, 8))


def d2mp_ob_forward(x0, t, e_rand, context, w1_packed, w2_packed, tb=None):
    """Scalar training loss of D2MP_OB.forward (weight=True branch).

    w1_packed : bf16 (round_up(CTX,16)+round_up(D,16)+32, H) = [w1c|w1x|w1b|b1]
    w2_packed : bf16 (round_up(H,16)+16, D)                  = [w2|b2]
    """
    B, D = x0.shape
    CTX = context.shape[1]
    H = w1_packed.shape[1]
    off_x, off_wb, off_b1, _ = _w1_offsets(D, CTX)
    off_b2, _ = _w2_offsets(H)

    TB = _choose_tb(B) if tb is None else tb
    G = pl.cdiv(B, TB)
    B_pad = G * TB
    W = CTX + 1 + 2 * D                     # [ctx | t | x0 | e_rand]

    # ---- pack the four lane-sparse activations into ONE f32 slab ----
    act = jnp.concatenate([context, t, x0, e_rand], axis=1)        # (B, W)
    if B_pad != B:
        # pad rows get t=1 (keeps log/rsqrt finite); they are masked in-kernel
        pad = jnp.zeros((B_pad - B, W), jnp.float32).at[:, CTX].set(1.0)
        act = jnp.concatenate([act, pad], axis=0)

    def kernel(act_ref, w1_ref, w2_ref, out_ref):
        ctx = act_ref[:, 0:CTX]                          # lane-aligned MXU op
        t_ = act_ref[:, CTX:CTX + 1]                     # (TB, 1)
        x0_ = act_ref[:, CTX + 1:CTX + 1 + D]            # (TB, D)
        noise = act_ref[:, CTX + 1 + D:CTX + 1 + 2 * D]  # (TB, D)

        # bf16 weight slabs, resident across grid steps (constant index_map);
        # the rank-1 / bias rows are cast back to f32 for the VPU math.
        w1c = w1_ref[0:CTX, :]
        w1x = w1_ref[off_x:off_x + D, :]
        w1b = w1_ref[off_wb:off_wb + 1, :].astype(jnp.float32)
        b1 = w1_ref[off_b1:off_b1 + 1, :].astype(jnp.float32)
        w2 = w2_ref[0:H, :]
        b2 = w2_ref[off_b2:off_b2 + 1, :].astype(jnp.float32)

        # ---- q_sample: x_noisy = x0 + C*t + sqrt(t)*noise,  C = -x0 ----
        inv_sqrt_t = lax.rsqrt(t_)           # one EUP op feeds both sqrt(t)
        sqrt_t = t_ * inv_sqrt_t             # and the later 1/sqrt(t) factor
        C = -x0_
        x_noisy = x0_ + C * t_ + sqrt_t * noise
        beta = jnp.log(t_) * 0.25

        # ---- net: 2-layer tanh MLP; concat as split matmuls, the rank-1
        # beta term as a VPU broadcast FMA (no K=1 MXU matmul) ----
        bf = jnp.bfloat16
        h = (jnp.dot(x_noisy.astype(bf), w1x,
                     preferred_element_type=jnp.float32)
             + jnp.dot(ctx.astype(bf), w1c,
                       preferred_element_type=jnp.float32)
             + beta * w1b + b1)
        h = jnp.tanh(h)
        C_pred = jnp.dot(h.astype(bf), w2,
                         preferred_element_type=jnp.float32) + b2

        # ---- fused weighted smooth-L1 loss ----
        # noise_pred - noise == (1 - t)/sqrt(t) * (C_pred - C), so the
        # explicit noise_pred reconstruction is algebraically folded away.
        d = C_pred - C
        dn = (1.0 - t_) * inv_sqrt_t * d
        num = t_ * t_ - t_ + 1.0                         # shared numerator
        sw1 = num * pl.reciprocal(t_, approx=True)       # EUP, off the VALU
        sw2 = num * pl.reciprocal(1.0 - t_ + EPS, approx=True)
        loss = sw1 * _smooth_l1_diff(d) + sw2 * _smooth_l1_diff(dn)

        # ---- per-block partial sum (safe under the "parallel" grid axis) --
        row_sum = jnp.sum(loss, axis=1, keepdims=True)   # (TB, 1)
        if B_pad != B:                                   # mask padded rows
            row_id = (pl.program_id(0) * TB
                      + lax.broadcasted_iota(jnp.int32, (TB, 1), 0))
            row_sum = jnp.where(row_id < B, row_sum, 0.0)
        block_sum = jnp.sum(row_sum)
        # replicate block_sum/8 over the (8,1) block so the wrapper can just
        # sum every element of the partials array.
        out_ref[...] = jnp.full((8, 1), block_sum * 0.125, jnp.float32)

    partials = pl.pallas_call(
        kernel,
        out_shape=jax.ShapeDtypeStruct((G * 8, 1), jnp.float32),
        grid_spec=pltpu.PrefetchScalarGridSpec(
            num_scalar_prefetch=0,
            grid=(G,),
            in_specs=[
                pl.BlockSpec((TB, W), lambda i: (i, 0)),         # activations
                pl.BlockSpec(w1_packed.shape, lambda i: (0, 0)),  # resident
                pl.BlockSpec(w2_packed.shape, lambda i: (0, 0)),  # resident
            ],
            out_specs=pl.BlockSpec((8, 1), lambda i: (i, 0)),
        ),
        compiler_params=pltpu.CompilerParams(
            dimension_semantics=("parallel",)),
    )(act, w1_packed, w2_packed)

    return jnp.sum(partials) * (1.0 / (B * D))


def d2mp_ob_reference(x0, t, e_rand, context, w1_packed, w2_packed):
    """Pure-JAX reference of the same forward math, for verification."""
    D = x0.shape[1]
    CTX = context.shape[1]
    H = w1_packed.shape[1]
    off_x, off_wb, off_b1, _ = _w1_offsets(D, CTX)
    off_b2, _ = _w2_offsets(H)

    w1c = w1_packed[0:CTX]
    w1x = w1_packed[off_x:off_x + D]
    w1b = w1_packed[off_wb:off_wb + 1].astype(jnp.float32)
    b1 = w1_packed[off_b1:off_b1 + 1].astype(jnp.float32)
    w2 = w2_packed[0:H]
    b2 = w2_packed[off_b2:off_b2 + 1].astype(jnp.float32)

    bf = jnp.bfloat16
    C = -x0
    sqrt_t = jnp.sqrt(t)
    x_noisy = x0 + C * t + sqrt_t * e_rand
    beta = jnp.log(t) * 0.25
    h = jnp.tanh(
        jnp.dot(x_noisy.astype(bf), w1x, preferred_element_type=jnp.float32)
        + jnp.dot(context.astype(bf), w1c, preferred_element_type=jnp.float32)
        + beta * w1b + b1)
    pred = jnp.dot(h.astype(bf), w2, preferred_element_type=jnp.float32) + b2
    noise_pred = (x_noisy - (t - 1.0) * pred) / sqrt_t
    loss_C = _smooth_l1_diff(pred - C)
    loss_noise = _smooth_l1_diff(noise_pred - e_rand)
    sw1 = (t * t - t + 1.0) / t
    sw2 = (t * t - t + 1.0) / (1.0 - t + EPS)
    return jnp.mean(sw1 * loss_C + sw2 * loss_noise)


def make_params(key, point_dim, ctx_dim, hidden):
    k1, k2, k3, k4 = jax.random.split(key, 4)
    scale = 0.1
    w1x = scale * jax.random.normal(k1, (point_dim, hidden), jnp.float32)
    w1b = scale * jax.random.normal(k2, (1, hidden), jnp.float32)
    w1c = scale * jax.random.normal(k3, (ctx_dim, hidden), jnp.float32)
    b1 = jnp.zeros((1, hidden), jnp.float32)
    w2 = scale * jax.random.normal(k4, (hidden, point_dim), jnp.float32)
    b2 = jnp.zeros((1, point_dim), jnp.float32)
    # Pack ONCE outside the kernel into two bf16 HBM slabs (half the weight
    # DMA bytes, no per-call weight astype); every piece starts on a 16-row
    # (bf16 sublane-tile) boundary so in-kernel slices never cut a tile.
    off_x, off_wb, off_b1, n1 = _w1_offsets(point_dim, ctx_dim)
    off_b2, n2 = _w2_offsets(hidden)
    w1p = jnp.zeros((n1, hidden), jnp.float32)
    w1p = w1p.at[0:ctx_dim].set(w1c).at[off_x:off_x + point_dim].set(w1x)
    w1p = w1p.at[off_wb].set(w1b[0]).at[off_b1].set(b1[0])
    w2p = jnp.zeros((n2, point_dim), jnp.float32)
    w2p = w2p.at[0:hidden].set(w2).at[off_b2].set(b2[0])
    return w1p.astype(jnp.bfloat16), w2p.astype(jnp.bfloat16)


if __name__ == "__main__":
    B, D, CTX, H = 8, 4, 32, 64   # batch, point_dim, context_dim, hidden

    key = jax.random.PRNGKey(0)
    kx, kc, kt, kn, kp = jax.random.split(key, 5)

    x_0 = jax.random.normal(kx, (B, D), jnp.float32)
    context = jax.random.normal(kc, (B, CTX), jnp.float32)
    # t = rand(B) * (1 - eps) + eps   (host-side RNG of the PyTorch module)
    t = jax.random.uniform(kt, (B, 1), jnp.float32) * (1.0 - EPS) + EPS
    # e_rand = randn_like(x_0)
    e_rand = jax.random.normal(kn, (B, D), jnp.float32)

    w1_packed, w2_packed = make_params(kp, D, CTX, H)

    loss = d2mp_ob_forward(x_0, t, e_rand, context, w1_packed, w2_packed)
    jax.block_until_ready(loss)
    ref = d2mp_ob_reference(x_0, t, e_rand, context, w1_packed, w2_packed)
    jax.block_until_ready(ref)
    # tolerance covers the approx-reciprocal / rsqrt / loss-fusion deltas
    assert jnp.allclose(loss, ref, rtol=2e-3, atol=2e-3), (loss, ref)

    # second config: exercises the multi-block grid + pad-row masking path
    B2 = 20
    kx2, kc2, kt2, kn2 = jax.random.split(jax.random.PRNGKey(1), 4)
    x2 = jax.random.normal(kx2, (B2, D), jnp.float32)
    c2 = jax.random.normal(kc2, (B2, CTX), jnp.float32)
    t2 = jax.random.uniform(kt2, (B2, 1), jnp.float32) * (1.0 - EPS) + EPS
    e2 = jax.random.normal(kn2, (B2, D), jnp.float32)
    loss2 = d2mp_ob_forward(x2, t2, e2, c2, w1_packed, w2_packed, tb=8)
    jax.block_until_ready(loss2)
    ref2 = d2mp_ob_reference(x2, t2, e2, c2, w1_packed, w2_packed)
    jax.block_until_ready(ref2)
    assert jnp.allclose(loss2, ref2, rtol=2e-3, atol=2e-3), (loss2, ref2)

    print("KERNEL_OK")
</pallas_src>

<mosaic_0001>
module attributes {stable_mosaic.version = 11 : i64} {
  func.func @kernel(%arg0: i32, %arg1: memref<8x41xf32, #tpu.memory_space<vmem>>, %arg2: memref<80x64xbf16, #tpu.memory_space<vmem>>, %arg3: memref<80x4xbf16, #tpu.memory_space<vmem>>, %arg4: memref<8x1xf32, #tpu.memory_space<vmem>>) attributes {dimension_semantics = [#tpu.dimension_semantics<parallel>], iteration_bounds = array<i64: 1>, scalar_prefetch = 0 : i64, scratch_operands = 0 : i64, tpu.core_type = #tpu.core_type<tc>, window_params = [{transform_indices = @transform_0, window_bounds = array<i64: 8, 41>}, {pipeline_mode = #tpu.pipeline_mode<synchronous>, transform_indices = @transform_1, window_bounds = array<i64: 80, 64>}, {pipeline_mode = #tpu.pipeline_mode<synchronous>, transform_indices = @transform_2, window_bounds = array<i64: 80, 4>}, {transform_indices = @transform_3, window_bounds = array<i64: 8, 1>}]} {
    %c0 = arith.constant 0 : index
    %c0_0 = arith.constant 0 : index
    %0 = vector.load %arg1[%c0, %c0_0] : memref<8x41xf32, #tpu.memory_space<vmem>>, vector<8x32xf32>
    %c0_1 = arith.constant 0 : index
    %c32 = arith.constant 32 : index
    %1 = vector.load %arg1[%c0_1, %c32] : memref<8x41xf32, #tpu.memory_space<vmem>>, vector<8x1xf32>
    %c0_2 = arith.constant 0 : index
    %c33 = arith.constant 33 : index
    %2 = vector.load %arg1[%c0_2, %c33] : memref<8x41xf32, #tpu.memory_space<vmem>>, vector<8x4xf32>
    %c0_3 = arith.constant 0 : index
    %c37 = arith.constant 37 : index
    %3 = vector.load %arg1[%c0_3, %c37] : memref<8x41xf32, #tpu.memory_space<vmem>>, vector<8x4xf32>
    %c0_4 = arith.constant 0 : index
    %c0_5 = arith.constant 0 : index
    %4 = vector.load %arg2[%c0_4, %c0_5] : memref<80x64xbf16, #tpu.memory_space<vmem>>, vector<32x64xbf16>
    %c32_6 = arith.constant 32 : index
    %c0_7 = arith.constant 0 : index
    %5 = vector.load %arg2[%c32_6, %c0_7] : memref<80x64xbf16, #tpu.memory_space<vmem>>, vector<4x64xbf16>
    %c48 = arith.constant 48 : index
    %c0_8 = arith.constant 0 : index
    %6 = vector.load %arg2[%c48, %c0_8] : memref<80x64xbf16, #tpu.memory_space<vmem>>, vector<1x64xbf16>
    %7 = arith.extf %6 : vector<1x64xbf16> to vector<1x64xf32>
    %c64 = arith.constant 64 : index
    %c0_9 = arith.constant 0 : index
    %8 = vector.load %arg2[%c64, %c0_9] : memref<80x64xbf16, #tpu.memory_space<vmem>>, vector<1x64xbf16>
    %9 = arith.extf %8 : vector<1x64xbf16> to vector<1x64xf32>
    %c0_10 = arith.constant 0 : index
    %c0_11 = arith.constant 0 : index
    %10 = vector.load %arg3[%c0_10, %c0_11] : memref<80x4xbf16, #tpu.memory_space<vmem>>, vector<64x4xbf16>
    %c64_12 = arith.constant 64 : index
    %c0_13 = arith.constant 0 : index
    %11 = vector.load %arg3[%c64_12, %c0_13] : memref<80x4xbf16, #tpu.memory_space<vmem>>, vector<1x4xbf16>
    %12 = arith.extf %11 : vector<1x4xbf16> to vector<1x4xf32>
    %13 = math.rsqrt %1 : vector<8x1xf32>
    %14 = arith.mulf %1, %13 : vector<8x1xf32>
    %cst = arith.constant 0.000000e+00 : f32
    %15 = vector.broadcast %cst : f32 to vector<8x4xf32>
    %16 = arith.subf %15, %2 : vector<8x4xf32>
    %17 = vector.broadcast %1 : vector<8x1xf32> to vector<8x4xf32>
    %18 = arith.mulf %16, %17 : vector<8x4xf32>
    %19 = arith.addf %2, %18 : vector<8x4xf32>
    %20 = vector.broadcast %14 : vector<8x1xf32> to vector<8x4xf32>
    %21 = arith.mulf %20, %3 : vector<8x4xf32>
    %22 = arith.addf %19, %21 : vector<8x4xf32>
    %23 = math.log %1 : vector<8x1xf32>
    %cst_14 = arith.constant 2.500000e-01 : f32
    %24 = vector.broadcast %cst_14 : f32 to vector<8x1xf32>
    %25 = arith.mulf %23, %24 : vector<8x1xf32>
    %26 = arith.truncf %22 : vector<8x4xf32> to vector<8x4xbf16>
    %cst_15 = arith.constant dense<0.000000e+00> : vector<8x64xf32>
    %27 = tpu.matmul %26, %5, %cst_15 {dimension_numbers = #tpu.dot_dimension_numbers<[1], [0], [0], [1], [0, 0, 1, 1], [], []>} : vector<8x4xbf16>, vector<4x64xbf16>, vector<8x64xf32> -> vector<8x64xf32>
    %28 = arith.truncf %0 : vector<8x32xf32> to vector<8x32xbf16>
    %cst_16 = arith.constant dense<0.000000e+00> : vector<8x64xf32>
    %29 = tpu.matmul %28, %4, %cst_16 {dimension_numbers = #tpu.dot_dimension_numbers<[1], [0], [0], [1], [0, 0, 1, 1], [], []>} : vector<8x32xbf16>, vector<32x64xbf16>, vector<8x64xf32> -> vector<8x64xf32>
    %30 = arith.addf %27, %29 : vector<8x64xf32>
    %31 = vector.broadcast %25 : vector<8x1xf32> to vector<8x64xf32>
    %32 = vector.broadcast %7 : vector<1x64xf32> to vector<8x64xf32>
    %33 = arith.mulf %31, %32 : vector<8x64xf32>
    %34 = arith.addf %30, %33 : vector<8x64xf32>
    %35 = vector.broadcast %9 : vector<1x64xf32> to vector<8x64xf32>
    %36 = arith.addf %34, %35 : vector<8x64xf32>
    %37 = math.tanh %36 : vector<8x64xf32>
    %38 = arith.truncf %37 : vector<8x64xf32> to vector<8x64xbf16>
    %cst_17 = arith.constant dense<0.000000e+00> : vector<8x4xf32>
    %39 = tpu.matmul %38, %10, %cst_17 {dimension_numbers = #tpu.dot_dimension_numbers<[1], [0], [0], [1], [0, 0, 1, 1], [], []>} : vector<8x64xbf16>, vector<64x4xbf16>, vector<8x4xf32> -> vector<8x4xf32>
    %40 = vector.broadcast %12 : vector<1x4xf32> to vector<8x4xf32>
    %41 = arith.addf %39, %40 : vector<8x4xf32>
    %42 = arith.subf %41, %16 : vector<8x4xf32>
    %cst_18 = arith.constant 1.000000e+00 : f32
    %43 = vector.broadcast %cst_18 : f32 to vector<8x1xf32>
    %44 = arith.subf %43, %1 : vector<8x1xf32>
    %45 = arith.mulf %44, %13 : vector<8x1xf32>
    %46 = vector.broadcast %45 : vector<8x1xf32> to vector<8x4xf32>
    %47 = arith.mulf %46, %42 : vector<8x4xf32>
    %48 = arith.mulf %1, %1 : vector<8x1xf32>
    %49 = arith.subf %48, %1 : vector<8x1xf32>
    %cst_19 = arith.constant 1.000000e+00 : f32
    %50 = vector.broadcast %cst_19 : f32 to vector<8x1xf32>
    %51 = arith.addf %49, %50 : vector<8x1xf32>
    %52 = tpu.reciprocal %1 {approx = true} : vector<8x1xf32> -> vector<8x1xf32>
    %53 = arith.mulf %51, %52 : vector<8x1xf32>
    %cst_20 = arith.constant 1.000000e+00 : f32
    %54 = vector.broadcast %cst_20 : f32 to vector<8x1xf32>
    %55 = arith.subf %54, %1 : vector<8x1xf32>
    %cst_21 = arith.constant 1.000000e-03 : f32
    %56 = vector.broadcast %cst_21 : f32 to vector<8x1xf32>
    %57 = arith.addf %55, %56 : vector<8x1xf32>
    %58 = tpu.reciprocal %57 {approx = true} : vector<8x1xf32> -> vector<8x1xf32>
    %59 = arith.mulf %51, %58 : vector<8x1xf32>
    %60 = math.absf %42 : vector<8x4xf32>
    %cst_22 = arith.constant 1.000000e+00 : f32
    %61 = vector.broadcast %cst_22 : f32 to vector<8x4xf32>
    %62 = arith.cmpf olt, %60, %61 : vector<8x4xf32>
    %cst_23 = arith.constant 5.000000e-01 : f32
    %63 = vector.broadcast %cst_23 : f32 to vector<8x4xf32>
    %64 = arith.mulf %63, %42 : vector<8x4xf32>
    %65 = arith.mulf %64, %42 : vector<8x4xf32>
    %cst_24 = arith.constant 5.000000e-01 : f32
    %66 = vector.broadcast %cst_24 : f32 to vector<8x4xf32>
    %67 = arith.subf %60, %66 : vector<8x4xf32>
    %68 = arith.select %62, %65, %67 : vector<8x4xi1>, vector<8x4xf32>
    %69 = vector.broadcast %53 : vector<8x1xf32> to vector<8x4xf32>
    %70 = arith.mulf %69, %68 : vector<8x4xf32>
    %71 = math.absf %47 : vector<8x4xf32>
    %cst_25 = arith.constant 1.000000e+00 : f32
    %72 = vector.broadcast %cst_25 : f32 to vector<8x4xf32>
    %73 = arith.cmpf olt, %71, %72 : vector<8x4xf32>
    %cst_26 = arith.constant 5.000000e-01 : f32
    %74 = vector.broadcast %cst_26 : f32 to vector<8x4xf32>
    %75 = arith.mulf %74, %47 : vector<8x4xf32>
    %76 = arith.mulf %75, %47 : vector<8x4xf32>
    %cst_27 = arith.constant 5.000000e-01 : f32
    %77 = vector.broadcast %cst_27 : f32 to vector<8x4xf32>
    %78 = arith.subf %71, %77 : vector<8x4xf32>
    %79 = arith.select %73, %76, %78 : vector<8x4xi1>, vector<8x4xf32>
    %80 = vector.broadcast %59 : vector<8x1xf32> to vector<8x4xf32>
    %81 = arith.mulf %80, %79 : vector<8x4xf32>
    %82 = arith.addf %70, %81 : vector<8x4xf32>
    %cst_28 = arith.constant dense<0.000000e+00> : vector<8xf32>
    %83 = vector.multi_reduction <add>, %82, %cst_28 [1] : vector<8x4xf32> to vector<8xf32>
    %84 = vector.shape_cast %83 : vector<8xf32> to vector<8x1xf32>
    %85 = vector.shape_cast %84 : vector<8x1xf32> to vector<1x8x1xf32>
    %cst_29 = arith.constant dense<0.000000e+00> : vector<1xf32>
    %86 = vector.multi_reduction <add>, %85, %cst_29 [1, 2] : vector<1x8x1xf32> to vector<1xf32>
    %87 = vector.shape_cast %86 : vector<1xf32> to vector<1x1x1xf32>
    %88 = vector.extract %87[0, 0, 0] : f32 from vector<1x1x1xf32>
    %cst_30 = arith.constant 1.250000e-01 : f32
    %89 = arith.mulf %88, %cst_30 : f32
    %90 = vector.broadcast %89 : f32 to vector<8x1xf32>
    %c0_31 = arith.constant 0 : index
    %c0_32 = arith.constant 0 : index
    %91 = vector.load %arg4[%c0_31, %c0_32] : memref<8x1xf32, #tpu.memory_space<vmem>>, vector<8x1xf32>
    tpu.vector_store %arg4[%c0_31, %c0_32], %90 {strides = array<i32>} : memref<8x1xf32, #tpu.memory_space<vmem>>, vector<8x1xf32>,
    return
  }
  func.func @transform_0(%arg0: i32) -> (i32, i32) {
    %c0_i32 = arith.constant 0 : i32
    %c0_i32_0 = arith.constant 0 : i32
    return %arg0, %c0_i32 : i32, i32
  }
  func.func @transform_1(%arg0: i32) -> (i32, i32) {
    %c0_i32 = arith.constant 0 : i32
    %c0_i32_0 = arith.constant 0 : i32
    %c0_i32_1 = arith.constant 0 : i32
    return %c0_i32, %c0_i32_0 : i32, i32
  }
  func.func @transform_2(%arg0: i32) -> (i32, i32) {
    %c0_i32 = arith.constant 0 : i32
    %c0_i32_0 = arith.constant 0 : i32
    %c0_i32_1 = arith.constant 0 : i32
    return %c0_i32, %c0_i32_0 : i32, i32
  }
  func.func @transform_3(%arg0: i32) -> (i32, i32) {
    %c0_i32 = arith.constant 0 : i32
    %c0_i32_0 = arith.constant 0 : i32
    return %arg0, %c0_i32 : i32, i32
  }
}

</mosaic_0001>

<llo_original>
// kernel: tpu_custom_call.1
$region0: #{tpu_custom_call.1}
  #allocation0 [shape = 'u32[]', space=smem, size = 0x4, offset = 0x4, fixed_abs, tag = 'smem constant byte address 0x4 - core index']
  #allocation1 [shape = 'u32[144,128]{1,0:T(1,128)}', space=vmem, size = 0x12000, scoped, tag = 'internal scratch']
  %s0 = inlined_call_operand.vmem [shape: f32[8,41], index: 0, kind: input, shape index: {}]
  %s1 = inlined_call_operand.vmem [shape: bf16[80,64], index: 1, kind: input, shape index: {}]
  %s2 = inlined_call_operand.vmem [shape: bf16[80,4], index: 2, kind: input, shape index: {}]
  %s3 = inlined_call_operand.vmem [shape: f32[8,1], index: 3, kind: output, shape index: {}]
  %s4 = sld [smem:[#allocation0]]
  $region22: #{tpu_custom_call.1} parent=0
    _
  %s6 = ssub.s32 1, %s4
  %s7 = scalar_select 0, %s6, %s4
  // Predicated region
  $region2: #{tpu_custom_call.1} parent=0 // pred_check
    _
  $region3: #{tpu_custom_call.1} parent=0 // pred_check_branch
    %9 = sbr.rel (0) target = $region5
  $region4: #{tpu_custom_call.1} parent=0 // pred_region
    _
  $region5: #{tpu_custom_call.1} parent=0 // pred_fallthru
    _
  // Predicated region
  $region6: #{tpu_custom_call.1} parent=0 // pred_check
    _
  $region7: #{tpu_custom_call.1} parent=0 // pred_check_branch
    %11 = sbr.rel (0) target = $region9
  $region8: #{tpu_custom_call.1} parent=0 // pred_region
    _
  $region9: #{tpu_custom_call.1} parent=0 // pred_fallthru
    _
  // Predicated region
  $region10: #{tpu_custom_call.1} parent=0 // pred_check
    _
  $region11: #{tpu_custom_call.1} parent=0 // pred_check_branch
    %13 = sbr.rel (0) target = $region13
  $region12: #{tpu_custom_call.1} parent=0 // pred_region
    _
  $region13: #{tpu_custom_call.1} parent=0 // pred_fallthru
    _
  %v15 = vld [vmem:[%s0] sm:$0xff]
  %v16 = vld [vmem:[%s1] sm:$0xf]
  %v17 = vld [vmem:[%s1 + $0x4] sm:$0xf]
  %v18 = vld [vmem:[%s1 + $0x8] sm:$0xf]
  %v19 = vld [vmem:[%s1 + $0xc] sm:$0xf]
  %v20 = vld [vmem:[%s1 + $0x10] sm:$0x3]
  %v21 = vld [vmem:[%s1 + $0x18] sm:$0x1]
  %v22 = vunpack.c.l.bf16 %v21
  %v23 = vld [vmem:[%s1 + $0x20] sm:$0x1]
  %v24 = vunpack.c.l.bf16 %v23
  %v25 = vld [vmem:[%s2] sm:$0xf]
  %v26 = vld [vmem:[%s2 + $0x4] sm:$0xf]
  %v27 = vld [vmem:[%s2 + $0x8] sm:$0xf]
  %v28 = vld [vmem:[%s2 + $0xc] sm:$0xf]
  %v29 = vld [vmem:[%s2 + $0x10] sm:$0xf]
  %v30 = vld [vmem:[%s2 + $0x14] sm:$0xf]
  %v31 = vld [vmem:[%s2 + $0x18] sm:$0xf]
  %v32 = vld [vmem:[%s2 + $0x1c] sm:$0xf]
  %v33 = vld [vmem:[%s2 + $0x20] sm:$0x1]
  %v34 = vunpack.c.l.bf16 %v33
  %v35 = vrsqrt.pop %v15
  %v36 = vmul.f32 %v15, %v35
  %v37 = vsub.f32 0.0, %v15
  %39 = vset.pattern.permute.xlu0 32
  %40 = vperm.xlu0 %39, %v15
  %v41 = vpop.permute.xlu0 %40
  %v43 = vmul.f32 %v37, %v41
  %v44 = vadd.f32 %v15, %v43
  %46 = vset.pattern.permute.xlu0 32
  %47 = vperm.xlu0 %46, %v36
  %v48 = vpop.permute.xlu0 %47
  %v50 = vmul.f32 %v48, %v15
  %52 = vrot.lane.b32.xlu0 %v50, 124
  %v53 = vpop.permute.xlu0 %52
  %v55 = vadd.f32 %v44, %v53
  %v56 = vlog2.pop %v15
  %v57 = vmul.f32 %v56, 0.6931472
  %v58 = vmul.f32 %v57, 0.25
  %v59 = vpack.c.bf16 %v55, %v55
  %v60 = vpack.c.bf16 %v15, %v15
  %v65 = vunpack.c.l.b16 %v16
  %v66 = vunpack.c.l.b16 %v17
  %v67 = vunpack.c.l.b16 %v18
  %v68 = vunpack.c.l.b16 %v19
  %v69 = vpack.c.b16 %v66, %v65
  %v70 = vpack.c.b16 %v68, %v67
  %vm73 = vcmask 261120
  %v75 = vsel %vm73, %v60, 0
  %77 = vmatprep.subr.bf16.mxu0 0
  %78 = vmatpush1.bf16.msra.mxu0 %v69
  %79 = vmatprep.subr.bf16.mxu0 0
  %80 = vmatpush1.bf16.msra.mxu0 %v70
  %81 = vmatprep.subr.bf16.mxu0 0
  %82 = vmatpush1.bf16.msra.mxu0 0
  %83 = vmatprep.subr.bf16.mxu0 0
  %84 = vmatpush1.bf16.msra.mxu0 0
  %85 = vmatprep.subr.bf16.mxu0 0
  %86 = vmatpush1.bf16.msra.mxu0 0
  %87 = vmatprep.subr.bf16.mxu0 0
  %88 = vmatpush1.bf16.msra.mxu0 0
  %89 = vmatprep.subr.bf16.mxu0 0
  %90 = vmatpush1.bf16.msra.mxu0 0
  %91 = vmatprep.subr.bf16.mxu0 0
  %92 = vmatpush1.bf16.msra.mxu0 0
  %93 = vmatprep.subr.bf16.mxu0 0
  %94 = vmatpush1.bf16.msra.mxu0 0
  %95 = vmatprep.subr.bf16.mxu0 0
  %96 = vmatpush1.bf16.msra.mxu0 0
  %97 = vmatprep.subr.bf16.mxu0 0
  %98 = vmatpush1.bf16.msra.mxu0 0
  %99 = vmatprep.subr.bf16.mxu0 0
  %100 = vmatpush1.bf16.msra.mxu0 0
  %101 = vmatprep.subr.bf16.mxu0 0
  %102 = vmatpush1.bf16.msra.mxu0 0
  %103 = vmatprep.subr.bf16.mxu0 0
  %104 = vmatpush1.bf16.msra.mxu0 0
  %105 = vmatprep.subr.bf16.mxu0 0
  %106 = vmatpush1.bf16.msra.mxu0 0
  %107 = vmatprep.subr.bf16.mxu0 0
  %108 = vmatpush1.bf16.msra.mxu0 0
  %109 = vmatprep.mubr.bf16.mxu0 0
  %110 = vmatmul.mubr.bf16.gmra.mrb[0].mxu0 %v75
  %v111 = vpop.f32.mrb[0].mxu0
  %v112 = vadd.f32 0.0, %v111
  %v113 = vpop.f32.mrb[0].mxu0
  %v114 = vpop.f32.mrb[0].mxu0
  %v115 = vpop.f32.mrb[0].mxu0
  %116 = vdwg.mxu0
  %118 = vrot.lane.b32.xlu0 %v59, 95
  %v119 = vpop.permute.xlu0 %118
  %vm120 = vcmask 31744
  %v122 = vsel %vm120, %v119, 0
  %vm124 = vcmask 1041408
  %v126 = vsel %vm124, %v20, 0
  %128 = vmatprep.subr.bf16.mxu0 0
  %129 = vmatpush1.bf16.msra.mxu0 %v126
  %130 = vmatprep.subr.bf16.mxu0 0
  %131 = vmatpush1.bf16.msra.mxu0 0
  %132 = vmatprep.subr.bf16.mxu0 0
  %133 = vmatpush1.bf16.msra.mxu0 0
  %134 = vmatprep.subr.bf16.mxu0 0
  %135 = vmatpush1.bf16.msra.mxu0 0
  %136 = vmatprep.subr.bf16.mxu0 0
  %137 = vmatpush1.bf16.msra.mxu0 0
  %138 = vmatprep.subr.bf16.mxu0 0
  %139 = vmatpush1.bf16.msra.mxu0 0
  %140 = vmatprep.subr.bf16.mxu0 0
  %141 = vmatpush1.bf16.msra.mxu0 0
  %142 = vmatprep.subr.bf16.mxu0 0
  %143 = vmatpush1.bf16.msra.mxu0 0
  %144 = vmatprep.subr.bf16.mxu0 0
  %145 = vmatpush1.bf16.msra.mxu0 0
  %146 = vmatprep.subr.bf16.mxu0 0
  %147 = vmatpush1.bf16.msra.mxu0 0
  %148 = vmatprep.subr.bf16.mxu0 0
  %149 = vmatpush1.bf16.msra.mxu0 0
  %150 = vmatprep.subr.bf16.mxu0 0
  %151 = vmatpush1.bf16.msra.mxu0 0
  %152 = vmatprep.subr.bf16.mxu0 0
  %153 = vmatpush1.bf16.msra.mxu0 0
  %154 = vmatprep.subr.bf16.mxu0 0
  %155 = vmatpush1.bf16.msra.mxu0 0
  %156 = vmatprep.subr.bf16.mxu0 0
  %157 = vmatpush1.bf16.msra.mxu0 0
  %158 = vmatprep.subr.bf16.mxu0 0
  %159 = vmatpush1.bf16.msra.mxu0 0
  %160 = vmatprep.mubr.bf16.mxu0 0
  %161 = vmatmul.mubr.bf16.gmra.mrb[0].mxu0 %v122
  %v162 = vpop.f32.mrb[0].mxu0
  %v163 = vadd.f32 %v112, %v162
  %v164 = vpop.f32.mrb[0].mxu0
  %v165 = vpop.f32.mrb[0].mxu0
  %v166 = vpop.f32.mrb[0].mxu0
  %167 = vdwg.mxu0
  %169 = vset.pattern.permute.xlu0 32
  %170 = vperm.xlu0 %169, %v58
  %v171 = vpop.permute.xlu0 %170
  %v173 = vlaneseq
  %v174 = vshrl.u32 %v173, 7
  %v175 = vsub.s32 0, %v174
  %v176 = vrot.slane %v22, %v175
  %v177 = vmul.f32 %v171, %v176
  %v178 = vadd.f32 %v163, %v177
  %v179 = vlaneseq
  %v180 = vshrl.u32 %v179, 7
  %v181 = vsub.s32 0, %v180
  %v182 = vrot.slane %v24, %v181
  %v183 = vadd.f32 %v178, %v182
  %v184 = vtanh.pop %v183
  %v185 = vpack.c.bf16 %v184, %v184
  %v186 = vlaneseq
  %v187 = vshrl.u32 %v186, 7
  %v188 = vsub.s32 0, %v187
  %v189 = vrot.slane %v34, %v188
  %v198 = vunpack.c.l.b16 %v25
  %v199 = vunpack.c.l.b16 %v26
  %v200 = vunpack.c.l.b16 %v27
  %v201 = vunpack.c.l.b16 %v28
  %v202 = vunpack.c.l.b16 %v29
  %v203 = vunpack.c.l.b16 %v30
  %v204 = vunpack.c.l.b16 %v31
  %v205 = vunpack.c.l.b16 %v32
  %v206 = vpack.c.b16 %v199, %v198
  %v207 = vpack.c.b16 %v201, %v200
  %v208 = vpack.c.b16 %v203, %v202
  %v209 = vpack.c.b16 %v205, %v204
  %vm214 = vcmask 523264
  %v216 = vsel %vm214, %v185, 0
  %218 = vmatprep.subr.bf16.mxu0 0
  %219 = vmatpush1.bf16.msra.mxu0 %v206
  %220 = vmatprep.subr.bf16.mxu0 0
  %221 = vmatpush1.bf16.msra.mxu0 %v207
  %222 = vmatprep.subr.bf16.mxu0 0
  %223 = vmatpush1.bf16.msra.mxu0 %v208
  %224 = vmatprep.subr.bf16.mxu0 0
  %225 = vmatpush1.bf16.msra.mxu0 %v209
  %226 = vmatprep.subr.bf16.mxu0 0
  %227 = vmatpush1.bf16.msra.mxu0 0
  %228 = vmatprep.subr.bf16.mxu0 0
  %229 = vmatpush1.bf16.msra.mxu0 0
  %230 = vmatprep.subr.bf16.mxu0 0
  %231 = vmatpush1.bf16.msra.mxu0 0
  %232 = vmatprep.subr.bf16.mxu0 0
  %233 = vmatpush1.bf16.msra.mxu0 0
  %234 = vmatprep.subr.bf16.mxu0 0
  %235 = vmatpush1.bf16.msra.mxu0 0
  %236 = vmatprep.subr.bf16.mxu0 0
  %237 = vmatpush1.bf16.msra.mxu0 0
  %238 = vmatprep.subr.bf16.mxu0 0
  %239 = vmatpush1.bf16.msra.mxu0 0
  %240 = vmatprep.subr.bf16.mxu0 0
  %241 = vmatpush1.bf16.msra.mxu0 0
  %242 = vmatprep.subr.bf16.mxu0 0
  %243 = vmatpush1.bf16.msra.mxu0 0
  %244 = vmatprep.subr.bf16.mxu0 0
  %245 = vmatpush1.bf16.msra.mxu0 0
  %246 = vmatprep.subr.bf16.mxu0 0
  %247 = vmatpush1.bf16.msra.mxu0 0
  %248 = vmatprep.subr.bf16.mxu0 0
  %249 = vmatpush1.bf16.msra.mxu0 0
  %250 = vmatprep.mubr.bf16.mxu0 0
  %251 = vmatmul.mubr.bf16.gmra.mrb[0].mxu0 %v216
  %v252 = vpop.f32.mrb[0].mxu0
  %v253 = vadd.f32 %v189, %v252
  %v254 = vpop.f32.mrb[0].mxu0
  %v255 = vpop.f32.mrb[0].mxu0
  %v256 = vpop.f32.mrb[0].mxu0
  %257 = vdwg.mxu0
  %259 = vrot.lane.b32.xlu0 %v37, 95
  %v260 = vpop.permute.xlu0 %259
  %v262 = vsub.f32 %v253, %v260
  %v263 = vsub.f32 1.0, %v15
  %v264 = vmul.f32 %v263, %v35
  %266 = vset.pattern.permute.xlu0 32
  %267 = vperm.xlu0 %266, %v264
  %v268 = vpop.permute.xlu0 %267
  %v270 = vmul.f32 %v268, %v262
  %v271 = vmul.f32 %v15, %v15
  %v272 = vsub.f32 %v271, %v15
  %v273 = vadd.f32 %v272, 1.0
  %v274 = vrcp.pop %v15
  %v275 = vmul.f32 %v273, %v274
  %v276 = vadd.f32 %v263, 0.001
  %v277 = vrcp.pop %v276
  %v278 = vmul.f32 %v273, %v277
  %v279 = vand.u32 2147483647, %v262
  %vm280 = vcmp.lt.f32.partialorder %v279, 1.0
  %v281 = vmul.f32 %v262, 0.5
  %v282 = vmul.f32 %v281, %v262
  %v283 = vsub.f32 %v279, 0.5
  %v284 = vsel %vm280, %v282, %v283
  %286 = vset.pattern.permute.xlu0 32
  %287 = vperm.xlu0 %286, %v275
  %v288 = vpop.permute.xlu0 %287
  %v290 = vmul.f32 %v288, %v284
  %v291 = vand.u32 2147483647, %v270
  %vm292 = vcmp.lt.f32.partialorder %v291, 1.0
  %v293 = vmul.f32 %v270, 0.5
  %v294 = vmul.f32 %v293, %v270
  %v295 = vsub.f32 %v291, 0.5
  %v296 = vsel %vm292, %v294, %v295
  %298 = vset.pattern.permute.xlu0 32
  %299 = vperm.xlu0 %298, %v278
  %v300 = vpop.permute.xlu0 %299
  %v302 = vmul.f32 %v300, %v296
  %v303 = vadd.f32 %v290, %v302
  %v304 = vsel %vm120, %v303, 0.0
  %305 = vadd.xlane.f32.xlu0 %v304
  %v306 = vpop.xlane.xlu0 %305
  %vm307 = vcmask 7168
  %v308 = vsel %vm307, %v306, 0.0
  %309 = vadd.xlane.f32.xlu0 %v308
  %v310 = vpop.xlane.xlu0 %309
  %v311 = vrot.slane %v310, 4
  %v312 = vadd.f32 %v310, %v311
  %v313 = vrot.slane %v312, 2
  %v314 = vadd.f32 %v312, %v313
  %v315 = vrot.slane %v314, 1
  %v316 = vadd.f32 %v314, %v315
  %s317 = vtos %v316
  %s318 = smul.f32 %s317, 0.125
  %v319 = vstv %s318
  %320 = vst.msk [vmem:[%s3] sm:$0xff] %vm307, %v319
  // Predicated region
  $region14: #{tpu_custom_call.1} parent=0 // pred_check
    _
  $region15: #{tpu_custom_call.1} parent=0 // pred_check_branch
    %322 = sbr.rel (0) target = $region17
  $region16: #{tpu_custom_call.1} parent=0 // pred_region
    _
  $region17: #{tpu_custom_call.1} parent=0 // pred_fallthru
    _
  // Predicated region
  $region18: #{tpu_custom_call.1} parent=0 // pred_check
    _
  $region19: #{tpu_custom_call.1} parent=0 // pred_check_branch
    %324 = sbr.rel (0) target = $region21
  $region20: #{tpu_custom_call.1} parent=0 // pred_region
    _
  $region21: #{tpu_custom_call.1} parent=0 // pred_fallthru
    _

</llo_original>
